<compile_context>
chip_gen: v7x
topology: tpu7x:2x2x1
jax: 0.10.0
libtpu: 0.0.40
codegen_flags: <defaults>
</compile_context>

<pallas_src>
import math

import jax
import jax.numpy as jnp
from jax.experimental import pallas as pl
from jax.experimental.pallas import tpu as pltpu


# ----------------------------------------------------------------------------
# helpers
# ----------------------------------------------------------------------------
def _round_up(n, m):
    return ((n + m - 1) // m) * m


def _pad2(a, rows, cols):
    r, c = a.shape
    if r == rows and c == cols:
        return a
    return jnp.pad(a, ((0, rows - r), (0, cols - c)))


def _repack_params(w_packed, b_packed, hidden_size, cell_size, c_pad, compute_dtype):
    """Split packed W (hidden+input, 4*C) into (W_h, W_x) and pad each gate's
    output block from C to c_pad lanes so gate boundaries sit on 128-lane
    multiples.  Bias stays fp32 (added after the fp32-accumulated matmul)."""
    f_in = w_packed.shape[0]
    w4 = w_packed.reshape(f_in, 4, cell_size)
    w4 = jnp.pad(w4, ((0, 0), (0, 0), (0, c_pad - cell_size)))
    w4 = w4.reshape(f_in, 4 * c_pad)
    w_h = w4[:hidden_size].astype(compute_dtype)
    w_x = w4[hidden_size:].astype(compute_dtype)
    b4 = b_packed.reshape(1, 4, cell_size)
    b4 = jnp.pad(b4, ((0, 0), (0, 0), (0, c_pad - cell_size)))
    b_p = b4.reshape(1, 4 * c_pad).astype(jnp.float32)
    return w_h, w_x, b_p


def _sigmoid_via_tanh(x):
    # sigmoid(x) == 0.5 * tanh(0.5 * x) + 0.5  -> one EUP push instead of exp+div
    return 0.5 * jnp.tanh(0.5 * x) + 0.5


# ----------------------------------------------------------------------------
# single-step kernel (the module forward)
# ----------------------------------------------------------------------------
def _lstm_cell_kernel(x_ref, h_ref, c_ref, wh_ref, wx_ref, b_ref,
                      h_next_ref, c_next_ref):
    # Gate pre-activations: [h, x] @ W + b computed as two MXU dots (no concat),
    # fp32 accumulation.
    z = jnp.dot(h_ref[...], wh_ref[...], preferred_element_type=jnp.float32)
    z = z + jnp.dot(x_ref[...], wx_ref[...], preferred_element_type=jnp.float32)
    z = z + b_ref[...].astype(jnp.float32)

    cp = c_next_ref.shape[1]                 # padded cell width (multiple of 128)
    f = _sigmoid_via_tanh(z[:, 0 * cp:1 * cp])   # forget gate
    i = _sigmoid_via_tanh(z[:, 1 * cp:2 * cp])   # input gate
    o = _sigmoid_via_tanh(z[:, 2 * cp:3 * cp])   # output gate
    g = jnp.tanh(z[:, 3 * cp:4 * cp])            # candidate cell

    c_prev = c_ref[...].astype(jnp.float32)      # state math in fp32
    c_next = f * c_prev + i * g
    h_next = o * jnp.tanh(c_next)

    c_next_ref[...] = c_next.astype(c_next_ref.dtype)
    h_next_ref[...] = h_next.astype(h_next_ref.dtype)


def lstm_cell_forward(input_t, w_packed, b_packed, h_prev=None, cell_prev=None,
                      *, hidden_size, cell_size, compute_dtype=None):
    """Single LSTMCell step.  w_packed: (hidden+input, 4*cell) gate order
    [forget|input|output|candidate]; b_packed: (1, 4*cell)."""
    B, input_size = input_t.shape
    dtype = input_t.dtype
    cdt = dtype if compute_dtype is None else compute_dtype
    if h_prev is None:
        h_prev = jnp.zeros((B, hidden_size), dtype=dtype)
    if cell_prev is None:
        cell_prev = jnp.zeros((B, cell_size), dtype=dtype)

    # TPU-friendly padding: batch -> multiple of 8 (sublanes), cell -> 128 (lanes).
    tile_b = 128 if B >= 128 else _round_up(B, 8)
    b_pad = _round_up(B, tile_b)
    c_pad = _round_up(cell_size, 128)

    w_h, w_x, b_p = _repack_params(w_packed, b_packed, hidden_size, cell_size,
                                   c_pad, cdt)
    x_p = _pad2(input_t, b_pad, input_size).astype(cdt)
    h_p = _pad2(h_prev, b_pad, hidden_size).astype(cdt)
    c_p = _pad2(cell_prev, b_pad, c_pad)

    nb = b_pad // tile_b
    h_next, c_next = pl.pallas_call(
        _lstm_cell_kernel,
        out_shape=(
            jax.ShapeDtypeStruct((b_pad, c_pad), dtype),
            jax.ShapeDtypeStruct((b_pad, c_pad), dtype),
        ),
        grid=(nb,),
        in_specs=[
            pl.BlockSpec((tile_b, input_size), lambda b: (b, 0)),
            pl.BlockSpec((tile_b, hidden_size), lambda b: (b, 0)),
            pl.BlockSpec((tile_b, c_pad), lambda b: (b, 0)),
            pl.BlockSpec((hidden_size, 4 * c_pad), lambda b: (0, 0)),  # resident
            pl.BlockSpec((input_size, 4 * c_pad), lambda b: (0, 0)),   # resident
            pl.BlockSpec((1, 4 * c_pad), lambda b: (0, 0)),            # resident
        ],
        out_specs=(
            pl.BlockSpec((tile_b, c_pad), lambda b: (b, 0)),
            pl.BlockSpec((tile_b, c_pad), lambda b: (b, 0)),
        ),
        compiler_params=pltpu.CompilerParams(dimension_semantics=("parallel",)),
    )(x_p, h_p, c_p, w_h, w_x, b_p)

    return h_next[:B, :cell_size], c_next[:B, :cell_size]


# ----------------------------------------------------------------------------
# weight-resident multi-step kernel (grid over T, state in VMEM scratch)
# ----------------------------------------------------------------------------
def _lstm_seq_kernel(x_ref, h0_ref, c0_ref, wh_ref, wx_ref, b_ref,
                     h_seq_ref, c_last_ref, h_s, c_s):
    t = pl.program_id(1)

    @pl.when(t == 0)
    def _():
        h_s[...] = h0_ref[...].astype(jnp.float32)
        c_s[...] = c0_ref[...].astype(jnp.float32)

    h_in = h_s[...].astype(wh_ref.dtype)
    z = jnp.dot(h_in, wh_ref[...], preferred_element_type=jnp.float32)
    z = z + jnp.dot(x_ref[0], wx_ref[...], preferred_element_type=jnp.float32)
    z = z + b_ref[...].astype(jnp.float32)

    cp = c_s.shape[1]
    f = _sigmoid_via_tanh(z[:, 0 * cp:1 * cp])
    i = _sigmoid_via_tanh(z[:, 1 * cp:2 * cp])
    o = _sigmoid_via_tanh(z[:, 2 * cp:3 * cp])
    g = jnp.tanh(z[:, 3 * cp:4 * cp])

    c_new = f * c_s[...] + i * g
    h_new = o * jnp.tanh(c_new)
    c_s[...] = c_new
    h_s[...] = h_new

    h_seq_ref[0] = h_new.astype(h_seq_ref.dtype)
    c_last_ref[...] = c_new.astype(c_last_ref.dtype)   # resident; final value written back


def lstm_sequence_forward(x_seq, w_packed, b_packed, h0=None, c0=None,
                          *, hidden_size, cell_size, compute_dtype=None):
    """Run the cell over a (T, B, input) sequence inside ONE pallas_call.
    Weights stay resident in VMEM across all T steps; h/c live in fp32 scratch."""
    assert hidden_size == cell_size, "recurrent stepping requires hidden_size == cell_size"
    T, B, input_size = x_seq.shape
    dtype = x_seq.dtype
    cdt = dtype if compute_dtype is None else compute_dtype
    if h0 is None:
        h0 = jnp.zeros((B, hidden_size), dtype=dtype)
    if c0 is None:
        c0 = jnp.zeros((B, cell_size), dtype=dtype)

    tile_b = 128 if B >= 128 else _round_up(B, 8)
    b_pad = _round_up(B, tile_b)
    c_pad = _round_up(cell_size, 128)

    w_h, w_x, b_p = _repack_params(w_packed, b_packed, hidden_size, cell_size,
                                   c_pad, cdt)
    # Zero-pad W_h's K rows to c_pad so the fp32 state scratch can be (tile_b, c_pad).
    w_h = jnp.pad(w_h, ((0, c_pad - hidden_size), (0, 0)))

    x_p = jnp.pad(x_seq, ((0, 0), (0, b_pad - B), (0, 0))).astype(cdt)
    h0_p = _pad2(h0, b_pad, c_pad)
    c0_p = _pad2(c0, b_pad, c_pad)

    nb = b_pad // tile_b
    h_seq, c_last = pl.pallas_call(
        _lstm_seq_kernel,
        out_shape=(
            jax.ShapeDtypeStruct((T, b_pad, c_pad), dtype),
            jax.ShapeDtypeStruct((b_pad, c_pad), dtype),
        ),
        grid=(nb, T),
        in_specs=[
            pl.BlockSpec((1, tile_b, input_size), lambda b, t: (t, b, 0)),
            pl.BlockSpec((tile_b, c_pad), lambda b, t: (b, 0)),
            pl.BlockSpec((tile_b, c_pad), lambda b, t: (b, 0)),
            pl.BlockSpec((c_pad, 4 * c_pad), lambda b, t: (0, 0)),      # W_h resident over T
            pl.BlockSpec((input_size, 4 * c_pad), lambda b, t: (0, 0)), # W_x resident over T
            pl.BlockSpec((1, 4 * c_pad), lambda b, t: (0, 0)),          # bias resident
        ],
        out_specs=(
            pl.BlockSpec((1, tile_b, c_pad), lambda b, t: (t, b, 0)),
            pl.BlockSpec((tile_b, c_pad), lambda b, t: (b, 0)),
        ),
        scratch_shapes=[
            pltpu.VMEM((tile_b, c_pad), jnp.float32),   # h state
            pltpu.VMEM((tile_b, c_pad), jnp.float32),   # c state
        ],
        compiler_params=pltpu.CompilerParams(
            dimension_semantics=("parallel", "arbitrary")),
    )(x_p, h0_p, c0_p, w_h, w_x, b_p)

    return h_seq[:, :B, :cell_size], c_last[:B, :cell_size]


# ----------------------------------------------------------------------------
# params + pure-JAX references
# ----------------------------------------------------------------------------
def init_params(key, input_size, hidden_size, cell_size, bias=True, dtype=jnp.float32):
    """nn.Linear-style init (uniform +-1/sqrt(fan_in)).  Returns W packed as
    (hidden+input, 4*cell) in gate order [forget, input, output, candidate]
    and bias packed as (1, 4*cell)."""
    fan_in = input_size + hidden_size
    bound = 1.0 / math.sqrt(fan_in)
    keys = jax.random.split(key, 8)
    ws, bs = [], []
    for g in range(4):
        w = jax.random.uniform(keys[2 * g], (fan_in, cell_size),
                               minval=-bound, maxval=bound, dtype=dtype)
        ws.append(w)
        if bias:
            b = jax.random.uniform(keys[2 * g + 1], (cell_size,),
                                   minval=-bound, maxval=bound, dtype=dtype)
        else:
            b = jnp.zeros((cell_size,), dtype=dtype)
        bs.append(b)
    w_packed = jnp.concatenate(ws, axis=1)            # (fan_in, 4C)
    b_packed = jnp.concatenate(bs, axis=0)[None, :]   # (1, 4C)
    return w_packed, b_packed


def _reference_forward(input_t, w_packed, b_packed, h_prev, cell_prev, cell_size):
    xh = jnp.concatenate([h_prev, input_t], axis=1)
    z = xh @ w_packed + b_packed
    f = jax.nn.sigmoid(z[:, 0 * cell_size:1 * cell_size])
    i = jax.nn.sigmoid(z[:, 1 * cell_size:2 * cell_size])
    o = jax.nn.sigmoid(z[:, 2 * cell_size:3 * cell_size])
    g = jnp.tanh(z[:, 3 * cell_size:4 * cell_size])
    c_next = f * cell_prev + i * g
    h_next = o * jnp.tanh(c_next)
    return h_next, c_next


def _reference_sequence(x_seq, w_packed, b_packed, h0, c0, cell_size):
    h, c = h0, c0
    hs = []
    for t in range(x_seq.shape[0]):
        h, c = _reference_forward(x_seq[t], w_packed, b_packed, h, c, cell_size)
        hs.append(h)
    return jnp.stack(hs, axis=0), c


# ----------------------------------------------------------------------------
# demo / correctness checks
# ----------------------------------------------------------------------------
if __name__ == "__main__":
    input_size, hidden_size, cell_size = 16, 32, 32
    batch, seq_len = 2, 6
    dtype = jnp.float32

    key = jax.random.PRNGKey(0)
    kw, kx, kh, kc, ks = jax.random.split(key, 5)

    w_packed, b_packed = init_params(kw, input_size, hidden_size, cell_size,
                                     bias=True, dtype=dtype)

    input_t = jax.random.normal(kx, (batch, input_size), dtype=dtype)
    h_prev = jax.random.normal(kh, (batch, hidden_size), dtype=dtype)
    cell_prev = jax.random.normal(kc, (batch, cell_size), dtype=dtype)

    # --- single cell step (module forward), fp32 ---
    h_next, c_next = lstm_cell_forward(
        input_t, w_packed, b_packed, h_prev, cell_prev,
        hidden_size=hidden_size, cell_size=cell_size)
    jax.block_until_ready((h_next, c_next))

    h_ref, c_ref = _reference_forward(input_t, w_packed, b_packed,
                                      h_prev, cell_prev, cell_size)
    assert h_next.shape == (batch, cell_size) and c_next.shape == (batch, cell_size)
    assert jnp.allclose(h_next, h_ref, atol=1e-4, rtol=1e-4)
    assert jnp.allclose(c_next, c_ref, atol=1e-4, rtol=1e-4)

    # --- default (None) h_prev / cell_prev path ---
    h0d, c0d = lstm_cell_forward(input_t, w_packed, b_packed,
                                 hidden_size=hidden_size, cell_size=cell_size)
    jax.block_until_ready((h0d, c0d))

    # --- bf16 matmul operands (half the weight DMA), fp32 accumulation/state ---
    h_bf, c_bf = lstm_cell_forward(
        input_t, w_packed, b_packed, h_prev, cell_prev,
        hidden_size=hidden_size, cell_size=cell_size, compute_dtype=jnp.bfloat16)
    jax.block_until_ready((h_bf, c_bf))
    assert jnp.allclose(h_bf, h_ref, atol=5e-2, rtol=5e-2)
    assert jnp.allclose(c_bf, c_ref, atol=5e-2, rtol=5e-2)

    # --- weight-resident multi-step sequence (one pallas_call, grid over T) ---
    x_seq = jax.random.normal(ks, (seq_len, batch, input_size), dtype=dtype)
    h_seq, c_last = lstm_sequence_forward(
        x_seq, w_packed, b_packed, h_prev, cell_prev,
        hidden_size=hidden_size, cell_size=cell_size)
    jax.block_until_ready((h_seq, c_last))
    h_seq_ref, c_last_ref = _reference_sequence(x_seq, w_packed, b_packed,
                                                h_prev, cell_prev, cell_size)
    assert jnp.allclose(h_seq, h_seq_ref, atol=1e-3, rtol=1e-3)
    assert jnp.allclose(c_last, c_last_ref, atol=1e-3, rtol=1e-3)

    print("KERNEL_OK")
</pallas_src>

<mosaic_0001>
module attributes {stable_mosaic.version = 11 : i64} {
  func.func @_lstm_cell_kernel(%arg0: i32, %arg1: memref<8x16xf32, #tpu.memory_space<vmem>>, %arg2: memref<8x32xf32, #tpu.memory_space<vmem>>, %arg3: memref<8x128xf32, #tpu.memory_space<vmem>>, %arg4: memref<32x512xf32, #tpu.memory_space<vmem>>, %arg5: memref<16x512xf32, #tpu.memory_space<vmem>>, %arg6: memref<1x512xf32, #tpu.memory_space<vmem>>, %arg7: memref<8x128xf32, #tpu.memory_space<vmem>>, %arg8: memref<8x128xf32, #tpu.memory_space<vmem>>) attributes {dimension_semantics = [#tpu.dimension_semantics<parallel>], iteration_bounds = array<i64: 1>, scalar_prefetch = 0 : i64, scratch_operands = 0 : i64, tpu.core_type = #tpu.core_type<tc>, window_params = [{transform_indices = @transform_0, window_bounds = array<i64: 8, 16>}, {transform_indices = @transform_1, window_bounds = array<i64: 8, 32>}, {transform_indices = @transform_2, window_bounds = array<i64: 8, 128>}, {pipeline_mode = #tpu.pipeline_mode<synchronous>, transform_indices = @transform_3, window_bounds = array<i64: 32, 512>}, {pipeline_mode = #tpu.pipeline_mode<synchronous>, transform_indices = @transform_4, window_bounds = array<i64: 16, 512>}, {pipeline_mode = #tpu.pipeline_mode<synchronous>, transform_indices = @transform_5, window_bounds = array<i64: 1, 512>}, {transform_indices = @transform_6, window_bounds = array<i64: 8, 128>}, {transform_indices = @transform_7, window_bounds = array<i64: 8, 128>}]} {
    %c0 = arith.constant 0 : index
    %c0_0 = arith.constant 0 : index
    %0 = vector.load %arg2[%c0, %c0_0] : memref<8x32xf32, #tpu.memory_space<vmem>>, vector<8x32xf32>
    %c0_1 = arith.constant 0 : index
    %c0_2 = arith.constant 0 : index
    %1 = vector.load %arg4[%c0_1, %c0_2] : memref<32x512xf32, #tpu.memory_space<vmem>>, vector<32x512xf32>
    %cst = arith.constant dense<0.000000e+00> : vector<8x512xf32>
    %2 = tpu.matmul %0, %1, %cst {dimension_numbers = #tpu.dot_dimension_numbers<[1], [0], [0], [1], [0, 0, 1, 1], [], []>} : vector<8x32xf32>, vector<32x512xf32>, vector<8x512xf32> -> vector<8x512xf32>
    %c0_3 = arith.constant 0 : index
    %c0_4 = arith.constant 0 : index
    %3 = vector.load %arg1[%c0_3, %c0_4] : memref<8x16xf32, #tpu.memory_space<vmem>>, vector<8x16xf32>
    %c0_5 = arith.constant 0 : index
    %c0_6 = arith.constant 0 : index
    %4 = vector.load %arg5[%c0_5, %c0_6] : memref<16x512xf32, #tpu.memory_space<vmem>>, vector<16x512xf32>
    %cst_7 = arith.constant dense<0.000000e+00> : vector<8x512xf32>
    %5 = tpu.matmul %3, %4, %cst_7 {dimension_numbers = #tpu.dot_dimension_numbers<[1], [0], [0], [1], [0, 0, 1, 1], [], []>} : vector<8x16xf32>, vector<16x512xf32>, vector<8x512xf32> -> vector<8x512xf32>
    %6 = arith.addf %2, %5 : vector<8x512xf32>
    %c0_8 = arith.constant 0 : index
    %c0_9 = arith.constant 0 : index
    %7 = vector.load %arg6[%c0_8, %c0_9] : memref<1x512xf32, #tpu.memory_space<vmem>>, vector<1x512xf32>
    %8 = vector.broadcast %7 : vector<1x512xf32> to vector<8x512xf32>
    %9 = arith.addf %6, %8 : vector<8x512xf32>
    %10 = vector.extract_strided_slice %9 {offsets = [0, 0], sizes = [8, 128], strides = [1, 1]} : vector<8x512xf32> to vector<8x128xf32>
    %cst_10 = arith.constant 5.000000e-01 : f32
    %11 = vector.broadcast %cst_10 : f32 to vector<8x128xf32>
    %12 = arith.mulf %11, %10 : vector<8x128xf32>
    %13 = math.tanh %12 : vector<8x128xf32>
    %cst_11 = arith.constant 5.000000e-01 : f32
    %14 = vector.broadcast %cst_11 : f32 to vector<8x128xf32>
    %15 = arith.mulf %14, %13 : vector<8x128xf32>
    %cst_12 = arith.constant 5.000000e-01 : f32
    %16 = vector.broadcast %cst_12 : f32 to vector<8x128xf32>
    %17 = arith.addf %15, %16 : vector<8x128xf32>
    %18 = vector.extract_strided_slice %9 {offsets = [0, 128], sizes = [8, 128], strides = [1, 1]} : vector<8x512xf32> to vector<8x128xf32>
    %cst_13 = arith.constant 5.000000e-01 : f32
    %19 = vector.broadcast %cst_13 : f32 to vector<8x128xf32>
    %20 = arith.mulf %19, %18 : vector<8x128xf32>
    %21 = math.tanh %20 : vector<8x128xf32>
    %cst_14 = arith.constant 5.000000e-01 : f32
    %22 = vector.broadcast %cst_14 : f32 to vector<8x128xf32>
    %23 = arith.mulf %22, %21 : vector<8x128xf32>
    %cst_15 = arith.constant 5.000000e-01 : f32
    %24 = vector.broadcast %cst_15 : f32 to vector<8x128xf32>
    %25 = arith.addf %23, %24 : vector<8x128xf32>
    %26 = vector.extract_strided_slice %9 {offsets = [0, 256], sizes = [8, 128], strides = [1, 1]} : vector<8x512xf32> to vector<8x128xf32>
    %cst_16 = arith.constant 5.000000e-01 : f32
    %27 = vector.broadcast %cst_16 : f32 to vector<8x128xf32>
    %28 = arith.mulf %27, %26 : vector<8x128xf32>
    %29 = math.tanh %28 : vector<8x128xf32>
    %cst_17 = arith.constant 5.000000e-01 : f32
    %30 = vector.broadcast %cst_17 : f32 to vector<8x128xf32>
    %31 = arith.mulf %30, %29 : vector<8x128xf32>
    %cst_18 = arith.constant 5.000000e-01 : f32
    %32 = vector.broadcast %cst_18 : f32 to vector<8x128xf32>
    %33 = arith.addf %31, %32 : vector<8x128xf32>
    %34 = vector.extract_strided_slice %9 {offsets = [0, 384], sizes = [8, 128], strides = [1, 1]} : vector<8x512xf32> to vector<8x128xf32>
    %35 = math.tanh %34 : vector<8x128xf32>
    %c0_19 = arith.constant 0 : index
    %c0_20 = arith.constant 0 : index
    %36 = vector.load %arg3[%c0_19, %c0_20] : memref<8x128xf32, #tpu.memory_space<vmem>>, vector<8x128xf32>
    %37 = arith.mulf %17, %36 : vector<8x128xf32>
    %38 = arith.mulf %25, %35 : vector<8x128xf32>
    %39 = arith.addf %37, %38 : vector<8x128xf32>
    %40 = math.tanh %39 : vector<8x128xf32>
    %41 = arith.mulf %33, %40 : vector<8x128xf32>
    %c0_21 = arith.constant 0 : index
    %c0_22 = arith.constant 0 : index
    %42 = vector.load %arg8[%c0_21, %c0_22] : memref<8x128xf32, #tpu.memory_space<vmem>>, vector<8x128xf32>
    tpu.vector_store %arg8[%c0_21, %c0_22], %39 {strides = array<i32>} : memref<8x128xf32, #tpu.memory_space<vmem>>, vector<8x128xf32>,
    %c0_23 = arith.constant 0 : index
    %c0_24 = arith.constant 0 : index
    %43 = vector.load %arg7[%c0_23, %c0_24] : memref<8x128xf32, #tpu.memory_space<vmem>>, vector<8x128xf32>
    tpu.vector_store %arg7[%c0_23, %c0_24], %41 {strides = array<i32>} : memref<8x128xf32, #tpu.memory_space<vmem>>, vector<8x128xf32>,
    return
  }
  func.func @transform_0(%arg0: i32) -> (i32, i32) {
    %c0_i32 = arith.constant 0 : i32
    %c0_i32_0 = arith.constant 0 : i32
    return %arg0, %c0_i32 : i32, i32
  }
  func.func @transform_1(%arg0: i32) -> (i32, i32) {
    %c0_i32 = arith.constant 0 : i32
    %c0_i32_0 = arith.constant 0 : i32
    return %arg0, %c0_i32 : i32, i32
  }
  func.func @transform_2(%arg0: i32) -> (i32, i32) {
    %c0_i32 = arith.constant 0 : i32
    %c0_i32_0 = arith.constant 0 : i32
    return %arg0, %c0_i32 : i32, i32
  }
  func.func @transform_3(%arg0: i32) -> (i32, i32) {
    %c0_i32 = arith.constant 0 : i32
    %c0_i32_0 = arith.constant 0 : i32
    %c0_i32_1 = arith.constant 0 : i32
    return %c0_i32, %c0_i32_0 : i32, i32
  }
  func.func @transform_4(%arg0: i32) -> (i32, i32) {
    %c0_i32 = arith.constant 0 : i32
    %c0_i32_0 = arith.constant 0 : i32
    %c0_i32_1 = arith.constant 0 : i32
    return %c0_i32, %c0_i32_0 : i32, i32
  }
  func.func @transform_5(%arg0: i32) -> (i32, i32) {
    %c0_i32 = arith.constant 0 : i32
    %c0_i32_0 = arith.constant 0 : i32
    %c0_i32_1 = arith.constant 0 : i32
    return %c0_i32, %c0_i32_0 : i32, i32
  }
  func.func @transform_6(%arg0: i32) -> (i32, i32) {
    %c0_i32 = arith.constant 0 : i32
    %c0_i32_0 = arith.constant 0 : i32
    return %arg0, %c0_i32 : i32, i32
  }
  func.func @transform_7(%arg0: i32) -> (i32, i32) {
    %c0_i32 = arith.constant 0 : i32
    %c0_i32_0 = arith.constant 0 : i32
    return %arg0, %c0_i32 : i32, i32
  }
}

</mosaic_0001>

<llo_original>
// kernel: tpu_custom_call.1
$region0: #{tpu_custom_call.1}
  #allocation0 [shape = 'u32[]', space=smem, size = 0x4, offset = 0x4, fixed_abs, tag = 'smem constant byte address 0x4 - core index']
  #allocation1 [shape = 'u32[144,128]{1,0:T(1,128)}', space=vmem, size = 0x12000, scoped, tag = 'internal scratch']
  %s0 = inlined_call_operand.hbm [shape: f32[8,16], index: 0, kind: input, shape index: {}]
  %s1 = inlined_call_operand.hbm [shape: f32[8,32], index: 1, kind: input, shape index: {}]
  %s2 = inlined_call_operand.hbm [shape: f32[8,128], index: 2, kind: input, shape index: {}]
  %s3 = inlined_call_operand.hbm [shape: f32[32,512], index: 3, kind: input, shape index: {}]
  %s4 = inlined_call_operand.hbm [shape: f32[16,512], index: 4, kind: input, shape index: {}]
  %s5 = inlined_call_operand.vmem [shape: f32[1,512], index: 5, kind: input, shape index: {}]
  %s6 = inlined_call_operand.hbm [shape: f32[8,128], index: 6, kind: output, shape index: {0}]
  %s7 = inlined_call_operand.hbm [shape: f32[8,128], index: 7, kind: output, shape index: {1}]
  %8 = xla_tuple %s6, %s7
  %s9 = sld [smem:[#allocation0]]
  $region62: #{tpu_custom_call.1} parent=0
    _
  %s11 = ssub.s32 1, %s9
  %s12 = scalar_select 0, %s11, %s9
  $region1: #{tpu_custom_call.1} parent=0
    #allocation2 [shape = 'u8[4096]{0}', space=vmem, size = 0x1000, scoped, tag = 'input window, operand 0, single buffered']
    #allocation3 [shape = 's32[1]{0}', space=sflag, size = 0x4, scoped, tag = 'scoped memory for tpu_custom_call.1']
    #allocation4 [shape = 's32[1]{0}', space=sflag, size = 0x4, scoped, tag = 'scoped memory for tpu_custom_call.1']
    #allocation5 [shape = 'u8[4096]{0}', space=vmem, size = 0x1000, scoped, tag = 'input window, operand 1, single buffered']
    #allocation6 [shape = 's32[1]{0}', space=sflag, size = 0x4, scoped, tag = 'scoped memory for tpu_custom_call.1']
    #allocation7 [shape = 'u8[4096]{0}', space=vmem, size = 0x1000, scoped, tag = 'input window, operand 2, single buffered']
    #allocation8 [shape = 'u8[65536]{0}', space=vmem, size = 0x10000, scoped, tag = 'input window, operand 3, single buffered']
    #allocation9 [shape = 's32[1]{0}', space=sflag, size = 0x4, scoped, tag = 'scoped memory for tpu_custom_call.1']
    #allocation10 [shape = 'u8[32768]{0}', space=vmem, size = 0x8000, scoped, tag = 'input window, operand 4, single buffered']
    #allocation11 [shape = 'u8[4096]{0}', space=vmem, size = 0x1000, scoped, tag = 'output window, operand 0, single buffered']
    #allocation12 [shape = 'u8[4096]{0}', space=vmem, size = 0x1000, scoped, tag = 'output window, operand 1, single buffered']
    #allocation13 [shape = 's32[1]{0}', space=sflag, size = 0x4, scoped, tag = 'scoped memory for tpu_custom_call.1']
    %13 = vsyncpa [#allocation3], 0
    %14 = vsyncpa [#allocation6], 0
    %15 = vsyncpa [#allocation9], 0
    %16 = vsyncpa [#allocation4], 0
    %17 = vsyncpa [#allocation13], 0
    // Predicated region
    $region2: #{tpu_custom_call.1} parent=1 // pred_check
      _
    $region3: #{tpu_custom_call.1} parent=1 // pred_check_branch
      %19 = sbr.rel (0) target = $region5
    $region4: #{tpu_custom_call.1} parent=1 // pred_region
      %s21 = ssub.s32 128, 128
      %22 = vsyncadd [#allocation3], %s21
      %s24 = sshll.u32 [#allocation2], 4
      %s25 = int_to_ptr.vmem [resolvable:$true] %s24
      %27 = dma.hbm_to_vmem [thread:$0]  %s0, 128, %s25, [#allocation3]
    $region5: #{tpu_custom_call.1} parent=1 // pred_fallthru
      _
    // Predicated region
    $region6: #{tpu_custom_call.1} parent=1 // pred_check
      _
    $region7: #{tpu_custom_call.1} parent=1 // pred_check_branch
      %29 = sbr.rel (0) target = $region9
    $region8: #{tpu_custom_call.1} parent=1 // pred_region
      %s31 = ssub.s32 128, 128
      %32 = vsyncadd [#allocation6], %s31
      %s34 = sshll.u32 [#allocation5], 4
      %s35 = int_to_ptr.vmem [resolvable:$true] %s34
      %37 = dma.hbm_to_vmem [thread:$0]  %s1, 128, %s35, [#allocation6]
    $region9: #{tpu_custom_call.1} parent=1 // pred_fallthru
      _
    // Predicated region
    $region10: #{tpu_custom_call.1} parent=1 // pred_check
      _
    $region11: #{tpu_custom_call.1} parent=1 // pred_check_branch
      %39 = sbr.rel (0) target = $region13
    $region12: #{tpu_custom_call.1} parent=1 // pred_region
      %s41 = ssub.s32 128, 128
      %42 = vsyncadd [#allocation6], %s41
      %s44 = sshll.u32 [#allocation7], 4
      %s45 = int_to_ptr.vmem [resolvable:$true] %s44
      %47 = dma.hbm_to_vmem [thread:$0]  %s2, 128, %s45, [#allocation6]
    $region13: #{tpu_custom_call.1} parent=1 // pred_fallthru
      _
    // Predicated region
    $region14: #{tpu_custom_call.1} parent=1 // pred_check
      _
    $region15: #{tpu_custom_call.1} parent=1 // pred_check_branch
      %49 = sbr.rel (0) target = $region17
    $region16: #{tpu_custom_call.1} parent=1 // pred_region
      %s51 = ssub.s32 2048, 2048
      %52 = vsyncadd [#allocation9], %s51
      %s53 = sshll.u32 [#allocation8], 4
      %s54 = int_to_ptr.vmem [resolvable:$true] %s53
      %59 = dma.hbm_to_vmem [thread:$0]  %s3, 2048, %s54, [#allocation9], 512, 512, 32
    $region17: #{tpu_custom_call.1} parent=1 // pred_fallthru
      _
    // Predicated region
    $region18: #{tpu_custom_call.1} parent=1 // pred_check
      _
    $region19: #{tpu_custom_call.1} parent=1 // pred_check_branch
      %61 = sbr.rel (0) target = $region21
    $region20: #{tpu_custom_call.1} parent=1 // pred_region
      %s63 = ssub.s32 1024, 1024
      %64 = vsyncadd [#allocation9], %s63
      %s65 = sshll.u32 [#allocation10], 4
      %s66 = int_to_ptr.vmem [resolvable:$true] %s65
      %71 = dma.hbm_to_vmem [thread:$0]  %s4, 1024, %s66, [#allocation9], 512, 512, 32
    $region21: #{tpu_custom_call.1} parent=1 // pred_fallthru
      _
    // Predicated region
    $region22: #{tpu_custom_call.1} parent=1 // pred_check
      _
    $region23: #{tpu_custom_call.1} parent=1 // pred_check_branch
      %73 = sbr.rel (0) target = $region25
    $region24: #{tpu_custom_call.1} parent=1 // pred_region
      _
    $region25: #{tpu_custom_call.1} parent=1 // pred_fallthru
      _
    // Predicated region
    $region26: #{tpu_custom_call.1} parent=1 // pred_check
      _
    $region27: #{tpu_custom_call.1} parent=1 // pred_check_branch
      %75 = sbr.rel (0) target = $region29
    $region28: #{tpu_custom_call.1} parent=1 // pred_region
      %76 = dma.done [#allocation3], 128
    $region29: #{tpu_custom_call.1} parent=1 // pred_fallthru
      _
    // Predicated region
    $region30: #{tpu_custom_call.1} parent=1 // pred_check
      _
    $region31: #{tpu_custom_call.1} parent=1 // pred_check_branch
      %78 = sbr.rel (0) target = $region33
    $region32: #{tpu_custom_call.1} parent=1 // pred_region
      %79 = dma.done [#allocation6], 128
    $region33: #{tpu_custom_call.1} parent=1 // pred_fallthru
      _
    // Predicated region
    $region34: #{tpu_custom_call.1} parent=1 // pred_check
      _
    $region35: #{tpu_custom_call.1} parent=1 // pred_check_branch
      %81 = sbr.rel (0) target = $region37
    $region36: #{tpu_custom_call.1} parent=1 // pred_region
      %82 = dma.done [#allocation6], 128
    $region37: #{tpu_custom_call.1} parent=1 // pred_fallthru
      _
    // Predicated region
    $region38: #{tpu_custom_call.1} parent=1 // pred_check
      _
    $region39: #{tpu_custom_call.1} parent=1 // pred_check_branch
      %84 = sbr.rel (0) target = $region41
    $region40: #{tpu_custom_call.1} parent=1 // pred_region
      %85 = dma.done [#allocation9], 2048
    $region41: #{tpu_custom_call.1} parent=1 // pred_fallthru
      _
    // Predicated region
    $region42: #{tpu_custom_call.1} parent=1 // pred_check
      _
    $region43: #{tpu_custom_call.1} parent=1 // pred_check_branch
      %87 = sbr.rel (0) target = $region45
    $region44: #{tpu_custom_call.1} parent=1 // pred_region
      %88 = dma.done [#allocation9], 1024
    $region45: #{tpu_custom_call.1} parent=1 // pred_fallthru
      _
    %v89 = vld [vmem:[#allocation5] sm:$0xff]
    %v90 = vld [vmem:[#allocation8] sm:$0xff]
    %v91 = vld [vmem:[#allocation8 + $0x8] sm:$0xff]
    %v92 = vld [vmem:[#allocation8 + $0x10] sm:$0xff]
    %v93 = vld [vmem:[#allocation8 + $0x18] sm:$0xff]
    %v94 = vld [vmem:[#allocation8 + $0x20] sm:$0xff]
    %v95 = vld [vmem:[#allocation8 + $0x28] sm:$0xff]
    %v96 = vld [vmem:[#allocation8 + $0x30] sm:$0xff]
    %v97 = vld [vmem:[#allocation8 + $0x38] sm:$0xff]
    %v98 = vld [vmem:[#allocation8 + $0x40] sm:$0xff]
    %v99 = vld [vmem:[#allocation8 + $0x48] sm:$0xff]
    %v100 = vld [vmem:[#allocation8 + $0x50] sm:$0xff]
    %v101 = vld [vmem:[#allocation8 + $0x58] sm:$0xff]
    %v102 = vld [vmem:[#allocation8 + $0x60] sm:$0xff]
    %v103 = vld [vmem:[#allocation8 + $0x68] sm:$0xff]
    %v104 = vld [vmem:[#allocation8 + $0x70] sm:$0xff]
    %v105 = vld [vmem:[#allocation8 + $0x78] sm:$0xff]
    %v106 = vld [vmem:[#allocation2] sm:$0xff]
    %v107 = vld [vmem:[#allocation10] sm:$0xff]
    %v108 = vld [vmem:[#allocation10 + $0x8] sm:$0xff]
    %v109 = vld [vmem:[#allocation10 + $0x10] sm:$0xff]
    %v110 = vld [vmem:[#allocation10 + $0x18] sm:$0xff]
    %v111 = vld [vmem:[#allocation10 + $0x20] sm:$0xff]
    %v112 = vld [vmem:[#allocation10 + $0x28] sm:$0xff]
    %v113 = vld [vmem:[#allocation10 + $0x30] sm:$0xff]
    %v114 = vld [vmem:[#allocation10 + $0x38] sm:$0xff]
    %vm115 = vcmask 130048
    %v117 = vsel %vm115, %v106, 0
    %119 = vmatprep.subr.mxu0 %v108
    %120 = vmatpush1.msra.mxu0 %v107
    %121 = vmatprep.subr.mxu0 %v112
    %122 = vmatpush1.msra.mxu0 %v111
    %123 = vmatprep.subr.mxu0 0.0
    %124 = vmatpush1.msra.mxu0 0.0
    %125 = vmatprep.subr.mxu0 0.0
    %126 = vmatpush1.msra.mxu0 0.0
    %127 = vmatprep.subr.mxu0 0.0
    %128 = vmatpush1.msra.mxu0 0.0
    %129 = vmatprep.subr.mxu0 0.0
    %130 = vmatpush1.msra.mxu0 0.0
    %131 = vmatprep.subr.mxu0 0.0
    %132 = vmatpush1.msra.mxu0 0.0
    %133 = vmatprep.subr.mxu0 0.0
    %134 = vmatpush1.msra.mxu0 0.0
    %135 = vmatprep.subr.mxu0 0.0
    %136 = vmatpush1.msra.mxu0 0.0
    %137 = vmatprep.subr.mxu0 0.0
    %138 = vmatpush1.msra.mxu0 0.0
    %139 = vmatprep.subr.mxu0 0.0
    %140 = vmatpush1.msra.mxu0 0.0
    %141 = vmatprep.subr.mxu0 0.0
    %142 = vmatpush1.msra.mxu0 0.0
    %143 = vmatprep.subr.mxu0 0.0
    %144 = vmatpush1.msra.mxu0 0.0
    %145 = vmatprep.subr.mxu0 0.0
    %146 = vmatpush1.msra.mxu0 0.0
    %147 = vmatprep.subr.mxu0 0.0
    %148 = vmatpush1.msra.mxu0 0.0
    %149 = vmatprep.subr.mxu0 0.0
    %150 = vmatpush1.msra.mxu0 0.0
    %151 = vmatprep.subr.mxu0 0.0
    %152 = vmatpush1.msra.mxu0 0.0
    %153 = vmatprep.subr.mxu0 0.0
    %154 = vmatpush1.msra.mxu0 0.0
    %155 = vmatprep.subr.mxu0 0.0
    %156 = vmatpush1.msra.mxu0 0.0
    %157 = vmatprep.subr.mxu0 0.0
    %158 = vmatpush1.msra.mxu0 0.0
    %159 = vmatprep.subr.mxu0 0.0
    %160 = vmatpush1.msra.mxu0 0.0
    %161 = vmatprep.subr.mxu0 0.0
    %162 = vmatpush1.msra.mxu0 0.0
    %163 = vmatprep.subr.mxu0 0.0
    %164 = vmatpush1.msra.mxu0 0.0
    %165 = vmatprep.subr.mxu0 0.0
    %166 = vmatpush1.msra.mxu0 0.0
    %167 = vmatprep.subr.mxu0 0.0
    %168 = vmatpush1.msra.mxu0 0.0
    %169 = vmatprep.subr.mxu0 0.0
    %170 = vmatpush1.msra.mxu0 0.0
    %171 = vmatprep.subr.mxu0 0.0
    %172 = vmatpush1.msra.mxu0 0.0
    %173 = vmatprep.subr.mxu0 0.0
    %174 = vmatpush1.msra.mxu0 0.0
    %175 = vmatprep.subr.mxu0 0.0
    %176 = vmatpush1.msra.mxu0 0.0
    %177 = vmatprep.subr.mxu0 0.0
    %178 = vmatpush1.msra.mxu0 0.0
    %179 = vmatprep.subr.mxu0 0.0
    %180 = vmatpush1.msra.mxu0 0.0
    %181 = vmatprep.subr.mxu0 0.0
    %182 = vmatpush1.msra.mxu0 0.0
    %183 = vmatprep.mubr.f32.mxu0 0.0
    %184 = vmatmul.mubr.f32.gmra.mrb[0].mxu0 %v117
    %v185 = vpop.f32.mrb[0].mxu0
    %v186 = vadd.f32 0.0, %v185
    %v187 = vpop.f32.mrb[0].mxu0
    %v188 = vadd.f32 0.0, %v187
    %189 = vdwg.mxu0
    %190 = vmatprep.subr.mxu0 %v110
    %191 = vmatpush1.msra.mxu0 %v109
    %192 = vmatprep.subr.mxu0 %v114
    %193 = vmatpush1.msra.mxu0 %v113
    %194 = vmatprep.subr.mxu0 0.0
    %195 = vmatpush1.msra.mxu0 0.0
    %196 = vmatprep.subr.mxu0 0.0
    %197 = vmatpush1.msra.mxu0 0.0
    %198 = vmatprep.subr.mxu0 0.0
    %199 = vmatpush1.msra.mxu0 0.0
    %200 = vmatprep.subr.mxu0 0.0
    %201 = vmatpush1.msra.mxu0 0.0
    %202 = vmatprep.subr.mxu0 0.0
    %203 = vmatpush1.msra.mxu0 0.0
    %204 = vmatprep.subr.mxu0 0.0
    %205 = vmatpush1.msra.mxu0 0.0
    %206 = vmatprep.subr.mxu0 0.0
    %207 = vmatpush1.msra.mxu0 0.0
    %208 = vmatprep.subr.mxu0 0.0
    %209 = vmatpush1.msra.mxu0 0.0
    %210 = vmatprep.subr.mxu0 0.0
    %211 = vmatpush1.msra.mxu0 0.0
    %212 = vmatprep.subr.mxu0 0.0
    %213 = vmatpush1.msra.mxu0 0.0
    %214 = vmatprep.subr.mxu0 0.0
    %215 = vmatpush1.msra.mxu0 0.0
    %216 = vmatprep.subr.mxu0 0.0
    %217 = vmatpush1.msra.mxu0 0.0
    %218 = vmatprep.subr.mxu0 0.0
    %219 = vmatpush1.msra.mxu0 0.0
    %220 = vmatprep.subr.mxu0 0.0
    %221 = vmatpush1.msra.mxu0 0.0
    %222 = vmatprep.subr.mxu0 0.0
    %223 = vmatpush1.msra.mxu0 0.0
    %224 = vmatprep.subr.mxu0 0.0
    %225 = vmatpush1.msra.mxu0 0.0
    %226 = vmatprep.subr.mxu0 0.0
    %227 = vmatpush1.msra.mxu0 0.0
    %228 = vmatprep.subr.mxu0 0.0
    %229 = vmatpush1.msra.mxu0 0.0
    %230 = vmatprep.subr.mxu0 0.0
    %231 = vmatpush1.msra.mxu0 0.0
    %232 = vmatprep.subr.mxu0 0.0
    %233 = vmatpush1.msra.mxu0 0.0
    %234 = vmatprep.subr.mxu0 0.0
    %235 = vmatpush1.msra.mxu0 0.0
    %236 = vmatprep.subr.mxu0 0.0
    %237 = vmatpush1.msra.mxu0 0.0
    %238 = vmatprep.subr.mxu0 0.0
    %239 = vmatpush1.msra.mxu0 0.0
    %240 = vmatprep.subr.mxu0 0.0
    %241 = vmatpush1.msra.mxu0 0.0
    %242 = vmatprep.subr.mxu0 0.0
    %243 = vmatpush1.msra.mxu0 0.0
    %244 = vmatprep.subr.mxu0 0.0
    %245 = vmatpush1.msra.mxu0 0.0
    %246 = vmatprep.subr.mxu0 0.0
    %247 = vmatpush1.msra.mxu0 0.0
    %248 = vmatprep.subr.mxu0 0.0
    %249 = vmatpush1.msra.mxu0 0.0
    %250 = vmatprep.subr.mxu0 0.0
    %251 = vmatpush1.msra.mxu0 0.0
    %252 = vmatprep.subr.mxu0 0.0
    %253 = vmatpush1.msra.mxu0 0.0
    %254 = vmatprep.mubr.f32.mxu0 0.0
    %255 = vmatmul.mubr.f32.gmra.mrb[0].mxu0 %v117
    %v256 = vpop.f32.mrb[0].mxu0
    %v257 = vadd.f32 0.0, %v256
    %v258 = vpop.f32.mrb[0].mxu0
    %v259 = vadd.f32 0.0, %v258
    %260 = vdwg.mxu0
    %vm261 = vcmask 261120
    %v263 = vsel %vm261, %v89, 0
    %265 = vmatprep.subr.mxu0 %v91
    %266 = vmatpush1.msra.mxu0 %v90
    %267 = vmatprep.subr.mxu0 %v95
    %268 = vmatpush1.msra.mxu0 %v94
    %269 = vmatprep.subr.mxu0 %v99
    %270 = vmatpush1.msra.mxu0 %v98
    %271 = vmatprep.subr.mxu0 %v103
    %272 = vmatpush1.msra.mxu0 %v102
    %273 = vmatprep.subr.mxu0 0.0
    %274 = vmatpush1.msra.mxu0 0.0
    %275 = vmatprep.subr.mxu0 0.0
    %276 = vmatpush1.msra.mxu0 0.0
    %277 = vmatprep.subr.mxu0 0.0
    %278 = vmatpush1.msra.mxu0 0.0
    %279 = vmatprep.subr.mxu0 0.0
    %280 = vmatpush1.msra.mxu0 0.0
    %281 = vmatprep.subr.mxu0 0.0
    %282 = vmatpush1.msra.mxu0 0.0
    %283 = vmatprep.subr.mxu0 0.0
    %284 = vmatpush1.msra.mxu0 0.0
    %285 = vmatprep.subr.mxu0 0.0
    %286 = vmatpush1.msra.mxu0 0.0
    %287 = vmatprep.subr.mxu0 0.0
    %288 = vmatpush1.msra.mxu0 0.0
    %289 = vmatprep.subr.mxu0 0.0
    %290 = vmatpush1.msra.mxu0 0.0
    %291 = vmatprep.subr.mxu0 0.0
    %292 = vmatpush1.msra.mxu0 0.0
    %293 = vmatprep.subr.mxu0 0.0
    %294 = vmatpush1.msra.mxu0 0.0
    %295 = vmatprep.subr.mxu0 0.0
    %296 = vmatpush1.msra.mxu0 0.0
    %297 = vmatprep.subr.mxu0 0.0
    %298 = vmatpush1.msra.mxu0 0.0
    %299 = vmatprep.subr.mxu0 0.0
    %300 = vmatpush1.msra.mxu0 0.0
    %301 = vmatprep.subr.mxu0 0.0
    %302 = vmatpush1.msra.mxu0 0.0
    %303 = vmatprep.subr.mxu0 0.0
    %304 = vmatpush1.msra.mxu0 0.0
    %305 = vmatprep.subr.mxu0 0.0
    %306 = vmatpush1.msra.mxu0 0.0
    %307 = vmatprep.subr.mxu0 0.0
    %308 = vmatpush1.msra.mxu0 0.0
    %309 = vmatprep.subr.mxu0 0.0
    %310 = vmatpush1.msra.mxu0 0.0
    %311 = vmatprep.subr.mxu0 0.0
    %312 = vmatpush1.msra.mxu0 0.0
    %313 = vmatprep.subr.mxu0 0.0
    %314 = vmatpush1.msra.mxu0 0.0
    %315 = vmatprep.subr.mxu0 0.0
    %316 = vmatpush1.msra.mxu0 0.0
    %317 = vmatprep.subr.mxu0 0.0
    %318 = vmatpush1.msra.mxu0 0.0
    %319 = vmatprep.subr.mxu0 0.0
    %320 = vmatpush1.msra.mxu0 0.0
    %321 = vmatprep.subr.mxu0 0.0
    %322 = vmatpush1.msra.mxu0 0.0
    %323 = vmatprep.subr.mxu0 0.0
    %324 = vmatpush1.msra.mxu0 0.0
    %325 = vmatprep.subr.mxu0 0.0
    %326 = vmatpush1.msra.mxu0 0.0
    %327 = vmatprep.subr.mxu0 0.0
    %328 = vmatpush1.msra.mxu0 0.0
    %329 = vmatprep.mubr.f32.mxu0 0.0
    %330 = vmatmul.mubr.f32.gmra.mrb[0].mxu0 %v263
    %v331 = vpop.f32.mrb[0].mxu0
    %v332 = vadd.f32 %v186, %v331
    %v333 = vpop.f32.mrb[0].mxu0
    %v334 = vadd.f32 %v188, %v333
    %335 = vdwg.mxu0
    %336 = vmatprep.subr.mxu0 %v93
    %337 = vmatpush1.msra.mxu0 %v92
    %338 = vmatprep.subr.mxu0 %v97
    %339 = vmatpush1.msra.mxu0 %v96
    %340 = vmatprep.subr.mxu0 %v101
    %341 = vmatpush1.msra.mxu0 %v100
    %342 = vmatprep.subr.mxu0 %v105
    %343 = vmatpush1.msra.mxu0 %v104
    %344 = vmatprep.subr.mxu0 0.0
    %345 = vmatpush1.msra.mxu0 0.0
    %346 = vmatprep.subr.mxu0 0.0
    %347 = vmatpush1.msra.mxu0 0.0
    %348 = vmatprep.subr.mxu0 0.0
    %349 = vmatpush1.msra.mxu0 0.0
    %350 = vmatprep.subr.mxu0 0.0
    %351 = vmatpush1.msra.mxu0 0.0
    %352 = vmatprep.subr.mxu0 0.0
    %353 = vmatpush1.msra.mxu0 0.0
    %354 = vmatprep.subr.mxu0 0.0
    %355 = vmatpush1.msra.mxu0 0.0
    %356 = vmatprep.subr.mxu0 0.0
    %357 = vmatpush1.msra.mxu0 0.0
    %358 = vmatprep.subr.mxu0 0.0
    %359 = vmatpush1.msra.mxu0 0.0
    %360 = vmatprep.subr.mxu0 0.0
    %361 = vmatpush1.msra.mxu0 0.0
    %362 = vmatprep.subr.mxu0 0.0
    %363 = vmatpush1.msra.mxu0 0.0
    %364 = vmatprep.subr.mxu0 0.0
    %365 = vmatpush1.msra.mxu0 0.0
    %366 = vmatprep.subr.mxu0 0.0
    %367 = vmatpush1.msra.mxu0 0.0
    %368 = vmatprep.subr.mxu0 0.0
    %369 = vmatpush1.msra.mxu0 0.0
    %370 = vmatprep.subr.mxu0 0.0
    %371 = vmatpush1.msra.mxu0 0.0
    %372 = vmatprep.subr.mxu0 0.0
    %373 = vmatpush1.msra.mxu0 0.0
    %374 = vmatprep.subr.mxu0 0.0
    %375 = vmatpush1.msra.mxu0 0.0
    %376 = vmatprep.subr.mxu0 0.0
    %377 = vmatpush1.msra.mxu0 0.0
    %378 = vmatprep.subr.mxu0 0.0
    %379 = vmatpush1.msra.mxu0 0.0
    %380 = vmatprep.subr.mxu0 0.0
    %381 = vmatpush1.msra.mxu0 0.0
    %382 = vmatprep.subr.mxu0 0.0
    %383 = vmatpush1.msra.mxu0 0.0
    %384 = vmatprep.subr.mxu0 0.0
    %385 = vmatpush1.msra.mxu0 0.0
    %386 = vmatprep.subr.mxu0 0.0
    %387 = vmatpush1.msra.mxu0 0.0
    %388 = vmatprep.subr.mxu0 0.0
    %389 = vmatpush1.msra.mxu0 0.0
    %390 = vmatprep.subr.mxu0 0.0
    %391 = vmatpush1.msra.mxu0 0.0
    %392 = vmatprep.subr.mxu0 0.0
    %393 = vmatpush1.msra.mxu0 0.0
    %394 = vmatprep.subr.mxu0 0.0
    %395 = vmatpush1.msra.mxu0 0.0
    %396 = vmatprep.subr.mxu0 0.0
    %397 = vmatpush1.msra.mxu0 0.0
    %398 = vmatprep.subr.mxu0 0.0
    %399 = vmatpush1.msra.mxu0 0.0
    %400 = vmatprep.mubr.f32.mxu0 0.0
    %401 = vmatmul.mubr.f32.gmra.mrb[0].mxu0 %v263
    %v402 = vpop.f32.mrb[0].mxu0
    %v403 = vadd.f32 %v257, %v402
    %v404 = vpop.f32.mrb[0].mxu0
    %v405 = vadd.f32 %v259, %v404
    %406 = vdwg.mxu0
    %v407 = vld [vmem:[%s5] sm:$0xf]
    %v409 = vlaneseq
    %v410 = vshrl.u32 %v409, 7
    %v411 = vsub.s32 0, %v410
    %v412 = vrot.slane %v407, %v411
    %v413 = vlaneseq
    %v414 = vshrl.u32 %v413, 7
    %v415 = vsub.s32 1, %v414
    %v416 = vrot.slane %v407, %v415
    %v417 = vlaneseq
    %v418 = vshrl.u32 %v417, 7
    %v419 = vsub.s32 2, %v418
    %v420 = vrot.slane %v407, %v419
    %v421 = vlaneseq
    %v422 = vshrl.u32 %v421, 7
    %v423 = vsub.s32 3, %v422
    %v424 = vrot.slane %v407, %v423
    %v429 = vadd.f32 %v332, %v412
    %v430 = vadd.f32 %v334, %v416
    %v431 = vadd.f32 %v403, %v420
    %v432 = vadd.f32 %v405, %v424
    %v433 = vmul.f32 %v429, 0.5
    %v434 = vtanh.pop %v433
    %v435 = vmul.f32 %v434, 0.5
    %v436 = vadd.f32 %v435, 0.5
    %v437 = vmul.f32 %v430, 0.5
    %v438 = vtanh.pop %v437
    %v439 = vmul.f32 %v438, 0.5
    %v440 = vadd.f32 %v439, 0.5
    %v441 = vmul.f32 %v431, 0.5
    %v442 = vtanh.pop %v441
    %v443 = vmul.f32 %v442, 0.5
    %v444 = vadd.f32 %v443, 0.5
    %v445 = vtanh.pop %v432
    %v446 = vld [vmem:[#allocation7] sm:$0xff]
    %v447 = vmul.f32 %v436, %v446
    %v448 = vmul.f32 %v440, %v445
    %v449 = vadd.f32 %v447, %v448
    %v450 = vtanh.pop %v449
    %v451 = vmul.f32 %v444, %v450
    %452 = vst [vmem:[#allocation12] sm:$0xff] %v449
    %453 = vst [vmem:[#allocation11] sm:$0xff] %v451
    // Predicated region
    $region46: #{tpu_custom_call.1} parent=1 // pred_check
      _
    $region47: #{tpu_custom_call.1} parent=1 // pred_check_branch
      %455 = sbr.rel (0) target = $region49
    $region48: #{tpu_custom_call.1} parent=1 // pred_region
      %s457 = ssub.s32 128, 128
      %458 = vsyncadd [#allocation4], %s457
      %s460 = sshll.u32 [#allocation11], 4
      %s461 = int_to_ptr.vmem [resolvable:$true] %s460
      %463 = dma.vmem_to_hbm [thread:$0]  %s461, 128, %s6, [#allocation4]
    $region49: #{tpu_custom_call.1} parent=1 // pred_fallthru
      _
    // Predicated region
    $region50: #{tpu_custom_call.1} parent=1 // pred_check
      _
    $region51: #{tpu_custom_call.1} parent=1 // pred_check_branch
      %465 = sbr.rel (0) target = $region53
    $region52: #{tpu_custom_call.1} parent=1 // pred_region
      %s467 = ssub.s32 128, 128
      %468 = vsyncadd [#allocation13], %s467
      %s470 = sshll.u32 [#allocation12], 4
      %s471 = int_to_ptr.vmem [resolvable:$true] %s470
      %473 = dma.vmem_to_hbm [thread:$0]  %s471, 128, %s7, [#allocation13]
    $region53: #{tpu_custom_call.1} parent=1 // pred_fallthru
      _
    // Predicated region
    $region54: #{tpu_custom_call.1} parent=1 // pred_check
      _
    $region55: #{tpu_custom_call.1} parent=1 // pred_check_branch
      %475 = sbr.rel (0) target = $region57
    $region56: #{tpu_custom_call.1} parent=1 // pred_region
      %476 = dma.done [#allocation4], 128
    $region57: #{tpu_custom_call.1} parent=1 // pred_fallthru
      _
    // Predicated region
    $region58: #{tpu_custom_call.1} parent=1 // pred_check
      _
    $region59: #{tpu_custom_call.1} parent=1 // pred_check_branch
      %478 = sbr.rel (0) target = $region61
    $region60: #{tpu_custom_call.1} parent=1 // pred_region
      %479 = dma.done [#allocation13], 128
    $region61: #{tpu_custom_call.1} parent=1 // pred_fallthru
      _
    %480 = vsyncpa [#allocation3], 1
    %481 = vsyncpa [#allocation6], 1
    %482 = vsyncpa [#allocation9], 1
    %483 = vsyncpa [#allocation4], 1
    %484 = vsyncpa [#allocation13], 1

</llo_original>
